<compile_context>
chip_gen: v6e
topology: v6e:2x2x1
jax: 0.10.0
libtpu: 0.0.40
codegen_flags: <defaults>
</compile_context>

<pallas_src>
import functools

import jax
import jax.numpy as jnp
from jax.experimental import pallas as pl
from jax.experimental.pallas import tpu as pltpu

_HIDDEN = 512
_EPS = 1e-5


def _round_up(x, m):
    return ((x + m - 1) // m) * m


def _fused_kernel(x_ref, w1_ref, s1_ref, w2_ref, b2_ref, out_ref):
    """Both predictor branches fused: two bf16 MXU matmuls + f32 epilogue.

    x:   (tile_n, F)   f32 activations tile (cast to bf16 for the MXU)
    w1:  (F, 2H)       bf16, [w1_cls*scale_cls | w1_box*scale_box]
    s1:  (1, 2H)       f32,  folded BN shift + first bias
    w2:  (2H, out_pad) bf16, block-diagonal [w2_cls ; w2_box], lane-padded
    b2:  (1, out_pad)  f32,  packed second biases
    out: (tile_n, out_pad) f32 lane-dense output slab
    """
    x = x_ref[...].astype(jnp.bfloat16)
    h = jnp.dot(x, w1_ref[...], preferred_element_type=jnp.float32)
    h = jnp.maximum(h + s1_ref[...], 0.0)          # folded BN + bias, ReLU (f32)
    # Dropout(0.3): identity at inference.
    out = jnp.dot(h.astype(jnp.bfloat16), w2_ref[...],
                  preferred_element_type=jnp.float32) + b2_ref[...]
    out_ref[...] = out.astype(out_ref.dtype)


def _fused_forward(x, w1, s1, w2, b2):
    n, f = x.shape
    two_h = w1.shape[1]
    out_pad = w2.shape[1]

    # Large tiles amortize per-step pipeline overhead; cap so the grid has
    # >= 2 steps when the batch allows it (keeps both v7x TCs busy).
    tile_n = max(8, min(1024, _round_up(pl.cdiv(n, 2), 8)))
    grid = (pl.cdiv(n, tile_n),)   # ragged last block handled by Pallas

    weight_bytes = (w1.size * w1.dtype.itemsize + w2.size * w2.dtype.itemsize
                    + s1.size * s1.dtype.itemsize + b2.size * b2.dtype.itemsize)
    cost = pl.CostEstimate(
        flops=2 * n * (f * two_h + two_h * out_pad),
        transcendentals=0,
        bytes_accessed=n * (f * x.dtype.itemsize + out_pad * 4) + weight_bytes,
    )

    return pl.pallas_call(
        _fused_kernel,
        out_shape=jax.ShapeDtypeStruct((n, out_pad), jnp.float32),
        grid=grid,
        in_specs=[
            pl.BlockSpec((tile_n, f), lambda i: (i, 0)),
            pl.BlockSpec((f, two_h), lambda i: (0, 0)),     # resident weights
            pl.BlockSpec((1, two_h), lambda i: (0, 0)),
            pl.BlockSpec((two_h, out_pad), lambda i: (0, 0)),
            pl.BlockSpec((1, out_pad), lambda i: (0, 0)),
        ],
        out_specs=pl.BlockSpec((tile_n, out_pad), lambda i: (i, 0)),
        compiler_params=pltpu.CompilerParams(
            dimension_semantics=("parallel",),
            vmem_limit_bytes=32 * 1024 * 1024,   # portable ceiling (v7x: 64 MiB)
        ),
        cost_estimate=cost,
    )(x, w1, s1, w2, b2)


@functools.partial(jax.jit, static_argnames=("num_classes",))
def enhanced_box_predictor(x, fused_params, *, num_classes):
    w1, s1, w2, b2 = fused_params
    out = _fused_forward(x, w1, s1, w2, b2)
    scores = out[:, :num_classes]
    bbox_deltas = out[:, num_classes:num_classes * 5]
    return scores, bbox_deltas


# ----------------------------------------------------------------------------
# Parameter construction (mirrors the PyTorch __init__) + host-side folding.
# ----------------------------------------------------------------------------
def _init_branch(key, in_features, out_dim):
    k1, k2 = jax.random.split(key)
    # PyTorch nn.Linear weight ~ N(0, 0.01), bias = 0; stored here as (in, out).
    w1 = 0.01 * jax.random.normal(k1, (in_features, _HIDDEN), jnp.float32)
    b1 = jnp.zeros((_HIDDEN,), jnp.float32)
    # Fresh BatchNorm1d: gamma=1, beta=0, running_mean=0, running_var=1.
    return dict(
        w1=w1, b1=b1,
        gamma=jnp.ones((_HIDDEN,), jnp.float32),
        beta=jnp.zeros((_HIDDEN,), jnp.float32),
        running_mean=jnp.zeros((_HIDDEN,), jnp.float32),
        running_var=jnp.ones((_HIDDEN,), jnp.float32),
        w2=0.01 * jax.random.normal(k2, (_HIDDEN, out_dim), jnp.float32),
        b2=jnp.zeros((out_dim,), jnp.float32),
    )


def init_params(key, in_features, num_classes):
    k_cls, k_box = jax.random.split(key)
    cls_branch = _init_branch(k_cls, in_features, num_classes)
    box_branch = _init_branch(k_box, in_features, num_classes * 4)
    return cls_branch, box_branch


def fold_params(cls_branch, box_branch, num_classes):
    """Fold BN + first bias into W1/shift, fuse both branches, pre-cast to bf16."""
    def fold_first(br):
        scale = br["gamma"] / jnp.sqrt(br["running_var"] + _EPS)
        shift = br["beta"] - br["running_mean"] * scale
        return br["w1"] * scale[None, :], br["b1"] * scale + shift

    w1c, s1c = fold_first(cls_branch)
    w1b, s1b = fold_first(box_branch)
    w1 = jnp.concatenate([w1c, w1b], axis=1).astype(jnp.bfloat16)   # (F, 2H)
    s1 = jnp.concatenate([s1c, s1b])[None, :]                       # (1, 2H) f32

    nc, nb = num_classes, num_classes * 4
    out_pad = _round_up(nc + nb, 128)                 # lane-dense output slab
    w2 = jnp.zeros((2 * _HIDDEN, out_pad), jnp.float32)
    w2 = w2.at[:_HIDDEN, :nc].set(cls_branch["w2"])
    w2 = w2.at[_HIDDEN:, nc:nc + nb].set(box_branch["w2"])
    w2 = w2.astype(jnp.bfloat16)                      # bf16 MXU operand
    b2 = jnp.zeros((1, out_pad), jnp.float32)
    b2 = b2.at[0, :nc].set(cls_branch["b2"])
    b2 = b2.at[0, nc:nc + nb].set(box_branch["b2"])
    return (w1, s1, w2, b2)


# ----------------------------------------------------------------------------
# Plain-JAX f32 reference (unfolded, per-branch) for the numerical check.
# Tolerance is loosened because the kernel uses bf16 MXU operands.
# ----------------------------------------------------------------------------
def _reference_branch(x, br):
    scale = br["gamma"] / jnp.sqrt(br["running_var"] + _EPS)
    shift = br["beta"] - br["running_mean"] * scale
    h = x @ br["w1"] + br["b1"]
    h = jnp.maximum(h * scale + shift, 0.0)
    return h @ br["w2"] + br["b2"]


if __name__ == "__main__":
    key = jax.random.PRNGKey(0)
    k_x, k_p = jax.random.split(key)

    batch = 8
    in_features = 64
    num_classes = 4

    x = jax.random.normal(k_x, (batch, in_features), jnp.float32)
    cls_branch, box_branch = init_params(k_p, in_features, num_classes)
    fused_params = fold_params(cls_branch, box_branch, num_classes)

    scores, bbox_deltas = enhanced_box_predictor(
        x, fused_params, num_classes=num_classes)
    scores, bbox_deltas = jax.block_until_ready((scores, bbox_deltas))

    assert scores.shape == (batch, num_classes)
    assert bbox_deltas.shape == (batch, num_classes * 4)

    ref_scores = _reference_branch(x, cls_branch)
    ref_boxes = _reference_branch(x, box_branch)
    # bf16 operands vs f32 reference: allow bf16-level tolerance.
    assert jnp.allclose(scores, ref_scores, atol=2e-3, rtol=2e-2), (
        float(jnp.max(jnp.abs(scores - ref_scores))))
    assert jnp.allclose(bbox_deltas, ref_boxes, atol=2e-3, rtol=2e-2), (
        float(jnp.max(jnp.abs(bbox_deltas - ref_boxes))))

    print("KERNEL_OK")
</pallas_src>

<mosaic_0001>
module attributes {stable_mosaic.version = 11 : i64} {
  func.func @_fused_kernel(%arg0: i32, %arg1: memref<8x64xf32, #tpu.memory_space<vmem>>, %arg2: memref<64x1024xbf16, #tpu.memory_space<vmem>>, %arg3: memref<1x1024xf32, #tpu.memory_space<vmem>>, %arg4: memref<1024x128xbf16, #tpu.memory_space<vmem>>, %arg5: memref<1x128xf32, #tpu.memory_space<vmem>>, %arg6: memref<8x128xf32, #tpu.memory_space<vmem>>) attributes {dimension_semantics = [#tpu.dimension_semantics<parallel>], iteration_bounds = array<i64: 1>, scalar_prefetch = 0 : i64, scratch_operands = 0 : i64, tpu.core_type = #tpu.core_type<tc>, window_params = [{transform_indices = @transform_0, window_bounds = array<i64: 8, 64>}, {pipeline_mode = #tpu.pipeline_mode<synchronous>, transform_indices = @transform_1, window_bounds = array<i64: 64, 1024>}, {pipeline_mode = #tpu.pipeline_mode<synchronous>, transform_indices = @transform_2, window_bounds = array<i64: 1, 1024>}, {pipeline_mode = #tpu.pipeline_mode<synchronous>, transform_indices = @transform_3, window_bounds = array<i64: 1024, 128>}, {pipeline_mode = #tpu.pipeline_mode<synchronous>, transform_indices = @transform_4, window_bounds = array<i64: 1, 128>}, {transform_indices = @transform_5, window_bounds = array<i64: 8, 128>}]} {
    %c0 = arith.constant 0 : index
    %c0_0 = arith.constant 0 : index
    %0 = vector.load %arg1[%c0, %c0_0] : memref<8x64xf32, #tpu.memory_space<vmem>>, vector<8x64xf32>
    %1 = arith.truncf %0 : vector<8x64xf32> to vector<8x64xbf16>
    %c0_1 = arith.constant 0 : index
    %c0_2 = arith.constant 0 : index
    %2 = vector.load %arg2[%c0_1, %c0_2] : memref<64x1024xbf16, #tpu.memory_space<vmem>>, vector<64x1024xbf16>
    %cst = arith.constant dense<0.000000e+00> : vector<8x1024xf32>
    %3 = tpu.matmul %1, %2, %cst {dimension_numbers = #tpu.dot_dimension_numbers<[1], [0], [0], [1], [0, 0, 1, 1], [], []>} : vector<8x64xbf16>, vector<64x1024xbf16>, vector<8x1024xf32> -> vector<8x1024xf32>
    %c0_3 = arith.constant 0 : index
    %c0_4 = arith.constant 0 : index
    %4 = vector.load %arg3[%c0_3, %c0_4] : memref<1x1024xf32, #tpu.memory_space<vmem>>, vector<1x1024xf32>
    %5 = vector.broadcast %4 : vector<1x1024xf32> to vector<8x1024xf32>
    %6 = arith.addf %3, %5 : vector<8x1024xf32>
    %cst_5 = arith.constant 0.000000e+00 : f32
    %7 = vector.broadcast %cst_5 : f32 to vector<8x1024xf32>
    %8 = arith.maximumf %6, %7 : vector<8x1024xf32>
    %9 = arith.truncf %8 : vector<8x1024xf32> to vector<8x1024xbf16>
    %c0_6 = arith.constant 0 : index
    %c0_7 = arith.constant 0 : index
    %10 = vector.load %arg4[%c0_6, %c0_7] : memref<1024x128xbf16, #tpu.memory_space<vmem>>, vector<1024x128xbf16>
    %cst_8 = arith.constant dense<0.000000e+00> : vector<8x128xf32>
    %11 = tpu.matmul %9, %10, %cst_8 {dimension_numbers = #tpu.dot_dimension_numbers<[1], [0], [0], [1], [0, 0, 1, 1], [], []>} : vector<8x1024xbf16>, vector<1024x128xbf16>, vector<8x128xf32> -> vector<8x128xf32>
    %c0_9 = arith.constant 0 : index
    %c0_10 = arith.constant 0 : index
    %12 = vector.load %arg5[%c0_9, %c0_10] : memref<1x128xf32, #tpu.memory_space<vmem>>, vector<1x128xf32>
    %13 = vector.broadcast %12 : vector<1x128xf32> to vector<8x128xf32>
    %14 = arith.addf %11, %13 : vector<8x128xf32>
    %c0_11 = arith.constant 0 : index
    %c0_12 = arith.constant 0 : index
    %15 = vector.load %arg6[%c0_11, %c0_12] : memref<8x128xf32, #tpu.memory_space<vmem>>, vector<8x128xf32>
    tpu.vector_store %arg6[%c0_11, %c0_12], %14 {strides = array<i32>} : memref<8x128xf32, #tpu.memory_space<vmem>>, vector<8x128xf32>,
    return
  }
  func.func @transform_0(%arg0: i32) -> (i32, i32) {
    %c0_i32 = arith.constant 0 : i32
    %c0_i32_0 = arith.constant 0 : i32
    return %arg0, %c0_i32 : i32, i32
  }
  func.func @transform_1(%arg0: i32) -> (i32, i32) {
    %c0_i32 = arith.constant 0 : i32
    %c0_i32_0 = arith.constant 0 : i32
    %c0_i32_1 = arith.constant 0 : i32
    return %c0_i32, %c0_i32_0 : i32, i32
  }
  func.func @transform_2(%arg0: i32) -> (i32, i32) {
    %c0_i32 = arith.constant 0 : i32
    %c0_i32_0 = arith.constant 0 : i32
    %c0_i32_1 = arith.constant 0 : i32
    return %c0_i32, %c0_i32_0 : i32, i32
  }
  func.func @transform_3(%arg0: i32) -> (i32, i32) {
    %c0_i32 = arith.constant 0 : i32
    %c0_i32_0 = arith.constant 0 : i32
    %c0_i32_1 = arith.constant 0 : i32
    return %c0_i32, %c0_i32_0 : i32, i32
  }
  func.func @transform_4(%arg0: i32) -> (i32, i32) {
    %c0_i32 = arith.constant 0 : i32
    %c0_i32_0 = arith.constant 0 : i32
    %c0_i32_1 = arith.constant 0 : i32
    return %c0_i32, %c0_i32_0 : i32, i32
  }
  func.func @transform_5(%arg0: i32) -> (i32, i32) {
    %c0_i32 = arith.constant 0 : i32
    %c0_i32_0 = arith.constant 0 : i32
    return %arg0, %c0_i32 : i32, i32
  }
}

</mosaic_0001>

<llo_original>
// kernel: enhanced_box_predictor.1
$region0: #{enhanced_box_predictor.1}
  #allocation0 [shape = 'u32[]', space=smem, size = 0x4, offset = 0x4, fixed_abs, tag = 'smem constant byte address 0x4 - core index']
  #allocation1 [shape = 'u32[144,128]{1,0:T(1,128)}', space=vmem, size = 0x12000, scoped, tag = 'internal scratch']
  %s0 = inlined_call_operand.hbm [shape: f32[8,64], index: 0, kind: input, shape index: {}]
  %s1 = inlined_call_operand.hbm [shape: bf16[64,1024], index: 1, kind: input, shape index: {}]
  %s2 = inlined_call_operand.hbm [shape: f32[1,1024], index: 2, kind: input, shape index: {}]
  %s3 = inlined_call_operand.hbm [shape: bf16[1024,128], index: 3, kind: input, shape index: {}]
  %s4 = inlined_call_operand.vmem [shape: f32[1,128], index: 4, kind: input, shape index: {}]
  %s5 = inlined_call_operand.vmem [shape: f32[8,128], index: 5, kind: output, shape index: {}]
  %s6 = sld [smem:[#allocation0]]
  $region46: #{enhanced_box_predictor.1} parent=0
    _
  %s8 = ssub.s32 1, %s6
  %s9 = scalar_select 0, %s8, %s6
  $region1: #{enhanced_box_predictor.1} parent=0
    #allocation2 [shape = 'u8[4096]{0}', space=vmem, size = 0x1000, scoped, tag = 'input window, operand 0, single buffered']
    #allocation3 [shape = 's32[1]{0}', space=sflag, size = 0x4, scoped, tag = 'scoped memory for enhanced_box_predictor.1']
    #allocation4 [shape = 'u8[131072]{0}', space=vmem, size = 0x20000, scoped, tag = 'input window, operand 1, single buffered']
    #allocation5 [shape = 's32[1]{0}', space=sflag, size = 0x4, scoped, tag = 'scoped memory for enhanced_box_predictor.1']
    #allocation6 [shape = 'u8[4096]{0}', space=vmem, size = 0x1000, scoped, tag = 'input window, operand 2, single buffered']
    #allocation7 [shape = 'u8[262144]{0}', space=vmem, size = 0x40000, scoped, tag = 'input window, operand 3, single buffered']
    #allocation8 [shape = 's32[1]{0}', space=sflag, size = 0x4, scoped, tag = 'scoped memory for enhanced_box_predictor.1']
    %10 = vsyncpa [#allocation3], 0
    %11 = vsyncpa [#allocation5], 0
    %12 = vsyncpa [#allocation8], 0
    // Predicated region
    $region2: #{enhanced_box_predictor.1} parent=1 // pred_check
      _
    $region3: #{enhanced_box_predictor.1} parent=1 // pred_check_branch
      %14 = sbr.rel (0) target = $region5
    $region4: #{enhanced_box_predictor.1} parent=1 // pred_region
      %s16 = ssub.s32 128, 128
      %17 = vsyncadd [#allocation3], %s16
      %s19 = sshll.u32 [#allocation2], 4
      %s20 = int_to_ptr.vmem [resolvable:$true] %s19
      %22 = dma.hbm_to_vmem [thread:$0]  %s0, 128, %s20, [#allocation3]
    $region5: #{enhanced_box_predictor.1} parent=1 // pred_fallthru
      _
    // Predicated region
    $region6: #{enhanced_box_predictor.1} parent=1 // pred_check
      _
    $region7: #{enhanced_box_predictor.1} parent=1 // pred_check_branch
      %24 = sbr.rel (0) target = $region9
    $region8: #{enhanced_box_predictor.1} parent=1 // pred_region
      %s26 = ssub.s32 4096, 4096
      %27 = vsyncadd [#allocation5], %s26
      %s28 = sshll.u32 [#allocation4], 4
      %s29 = int_to_ptr.vmem [resolvable:$true] %s28
      %34 = dma.hbm_to_vmem [thread:$0]  %s1, 4096, %s29, [#allocation5], 512, 512, 32
    $region9: #{enhanced_box_predictor.1} parent=1 // pred_fallthru
      _
    // Predicated region
    $region10: #{enhanced_box_predictor.1} parent=1 // pred_check
      _
    $region11: #{enhanced_box_predictor.1} parent=1 // pred_check_branch
      %36 = sbr.rel (0) target = $region13
    $region12: #{enhanced_box_predictor.1} parent=1 // pred_region
      %s38 = ssub.s32 128, 128
      %39 = vsyncadd [#allocation5], %s38
      %s41 = sshll.u32 [#allocation6], 4
      %s42 = int_to_ptr.vmem [resolvable:$true] %s41
      %44 = dma.hbm_to_vmem [thread:$0]  %s2, 128, %s42, [#allocation5]
    $region13: #{enhanced_box_predictor.1} parent=1 // pred_fallthru
      _
    // Predicated region
    $region14: #{enhanced_box_predictor.1} parent=1 // pred_check
      _
    $region15: #{enhanced_box_predictor.1} parent=1 // pred_check_branch
      %46 = sbr.rel (0) target = $region17
    $region16: #{enhanced_box_predictor.1} parent=1 // pred_region
      %s48 = ssub.s32 8192, 8192
      %49 = vsyncadd [#allocation8], %s48
      %s50 = sshll.u32 [#allocation7], 4
      %s51 = int_to_ptr.vmem [resolvable:$true] %s50
      %56 = dma.hbm_to_vmem [thread:$0]  %s3, 8192, %s51, [#allocation8], 64, 64, 4
    $region17: #{enhanced_box_predictor.1} parent=1 // pred_fallthru
      _
    // Predicated region
    $region18: #{enhanced_box_predictor.1} parent=1 // pred_check
      _
    $region19: #{enhanced_box_predictor.1} parent=1 // pred_check_branch
      %58 = sbr.rel (0) target = $region21
    $region20: #{enhanced_box_predictor.1} parent=1 // pred_region
      _
    $region21: #{enhanced_box_predictor.1} parent=1 // pred_fallthru
      _
    // Predicated region
    $region22: #{enhanced_box_predictor.1} parent=1 // pred_check
      _
    $region23: #{enhanced_box_predictor.1} parent=1 // pred_check_branch
      %60 = sbr.rel (0) target = $region25
    $region24: #{enhanced_box_predictor.1} parent=1 // pred_region
      %61 = dma.done [#allocation3], 128
    $region25: #{enhanced_box_predictor.1} parent=1 // pred_fallthru
      _
    // Predicated region
    $region26: #{enhanced_box_predictor.1} parent=1 // pred_check
      _
    $region27: #{enhanced_box_predictor.1} parent=1 // pred_check_branch
      %63 = sbr.rel (0) target = $region29
    $region28: #{enhanced_box_predictor.1} parent=1 // pred_region
      %64 = dma.done [#allocation5], 4096
    $region29: #{enhanced_box_predictor.1} parent=1 // pred_fallthru
      _
    // Predicated region
    $region30: #{enhanced_box_predictor.1} parent=1 // pred_check
      _
    $region31: #{enhanced_box_predictor.1} parent=1 // pred_check_branch
      %66 = sbr.rel (0) target = $region33
    $region32: #{enhanced_box_predictor.1} parent=1 // pred_region
      %67 = dma.done [#allocation5], 128
    $region33: #{enhanced_box_predictor.1} parent=1 // pred_fallthru
      _
    // Predicated region
    $region34: #{enhanced_box_predictor.1} parent=1 // pred_check
      _
    $region35: #{enhanced_box_predictor.1} parent=1 // pred_check_branch
      %69 = sbr.rel (0) target = $region37
    $region36: #{enhanced_box_predictor.1} parent=1 // pred_region
      %70 = dma.done [#allocation8], 8192
    $region37: #{enhanced_box_predictor.1} parent=1 // pred_fallthru
      _
    %v72 = vld [vmem:[#allocation2] sm:$0xff]
    %v73 = vpack.c.bf16 %v72, %v72
    %v74 = vld [vmem:[#allocation4] sm:$0xff]
    %v75 = vld [vmem:[#allocation4 + $0x8] sm:$0xff]
    %v76 = vld [vmem:[#allocation4 + $0x10] sm:$0xff]
    %v77 = vld [vmem:[#allocation4 + $0x18] sm:$0xff]
    %v78 = vld [vmem:[#allocation4 + $0x20] sm:$0xff]
    %v79 = vld [vmem:[#allocation4 + $0x28] sm:$0xff]
    %v80 = vld [vmem:[#allocation4 + $0x30] sm:$0xff]
    %v81 = vld [vmem:[#allocation4 + $0x38] sm:$0xff]
    %v82 = vld [vmem:[#allocation4 + $0x40] sm:$0xff]
    %v83 = vld [vmem:[#allocation4 + $0x48] sm:$0xff]
    %v84 = vld [vmem:[#allocation4 + $0x50] sm:$0xff]
    %v85 = vld [vmem:[#allocation4 + $0x58] sm:$0xff]
    %v86 = vld [vmem:[#allocation4 + $0x60] sm:$0xff]
    %v87 = vld [vmem:[#allocation4 + $0x68] sm:$0xff]
    %v88 = vld [vmem:[#allocation4 + $0x70] sm:$0xff]
    %v89 = vld [vmem:[#allocation4 + $0x78] sm:$0xff]
    %v90 = vld [vmem:[#allocation4 + $0x80] sm:$0xff]
    %v91 = vld [vmem:[#allocation4 + $0x88] sm:$0xff]
    %v92 = vld [vmem:[#allocation4 + $0x90] sm:$0xff]
    %v93 = vld [vmem:[#allocation4 + $0x98] sm:$0xff]
    %v94 = vld [vmem:[#allocation4 + $0xa0] sm:$0xff]
    %v95 = vld [vmem:[#allocation4 + $0xa8] sm:$0xff]
    %v96 = vld [vmem:[#allocation4 + $0xb0] sm:$0xff]
    %v97 = vld [vmem:[#allocation4 + $0xb8] sm:$0xff]
    %v98 = vld [vmem:[#allocation4 + $0xc0] sm:$0xff]
    %v99 = vld [vmem:[#allocation4 + $0xc8] sm:$0xff]
    %v100 = vld [vmem:[#allocation4 + $0xd0] sm:$0xff]
    %v101 = vld [vmem:[#allocation4 + $0xd8] sm:$0xff]
    %v102 = vld [vmem:[#allocation4 + $0xe0] sm:$0xff]
    %v103 = vld [vmem:[#allocation4 + $0xe8] sm:$0xff]
    %v104 = vld [vmem:[#allocation4 + $0xf0] sm:$0xff]
    %v105 = vld [vmem:[#allocation4 + $0xf8] sm:$0xff]
    %v106 = vld [vmem:[#allocation6] sm:$0xff]
    %v108 = vlaneseq
    %v109 = vshrl.u32 %v108, 7
    %v110 = vsub.s32 0, %v109
    %v111 = vrot.slane %v106, %v110
    %v112 = vlaneseq
    %v113 = vshrl.u32 %v112, 7
    %v114 = vsub.s32 1, %v113
    %v115 = vrot.slane %v106, %v114
    %v116 = vlaneseq
    %v117 = vshrl.u32 %v116, 7
    %v118 = vsub.s32 2, %v117
    %v119 = vrot.slane %v106, %v118
    %v120 = vlaneseq
    %v121 = vshrl.u32 %v120, 7
    %v122 = vsub.s32 3, %v121
    %v123 = vrot.slane %v106, %v122
    %v124 = vlaneseq
    %v125 = vshrl.u32 %v124, 7
    %v126 = vsub.s32 4, %v125
    %v127 = vrot.slane %v106, %v126
    %v128 = vlaneseq
    %v129 = vshrl.u32 %v128, 7
    %v130 = vsub.s32 5, %v129
    %v131 = vrot.slane %v106, %v130
    %v132 = vlaneseq
    %v133 = vshrl.u32 %v132, 7
    %v134 = vsub.s32 6, %v133
    %v135 = vrot.slane %v106, %v134
    %v136 = vlaneseq
    %v137 = vshrl.u32 %v136, 7
    %v138 = vsub.s32 7, %v137
    %v139 = vrot.slane %v106, %v138
    %v180 = vunpack.c.l.b16 %v74
    %v181 = vunpack.c.h.b16 %v74
    %v182 = vunpack.c.l.b16 %v75
    %v183 = vunpack.c.h.b16 %v75
    %v184 = vunpack.c.l.b16 %v76
    %v185 = vunpack.c.h.b16 %v76
    %v186 = vunpack.c.l.b16 %v77
    %v187 = vunpack.c.h.b16 %v77
    %v188 = vunpack.c.l.b16 %v78
    %v189 = vunpack.c.h.b16 %v78
    %v190 = vunpack.c.l.b16 %v79
    %v191 = vunpack.c.h.b16 %v79
    %v192 = vunpack.c.l.b16 %v80
    %v193 = vunpack.c.h.b16 %v80
    %v194 = vunpack.c.l.b16 %v81
    %v195 = vunpack.c.h.b16 %v81
    %v196 = vunpack.c.l.b16 %v82
    %v197 = vunpack.c.h.b16 %v82
    %v198 = vunpack.c.l.b16 %v83
    %v199 = vunpack.c.h.b16 %v83
    %v200 = vunpack.c.l.b16 %v84
    %v201 = vunpack.c.h.b16 %v84
    %v202 = vunpack.c.l.b16 %v85
    %v203 = vunpack.c.h.b16 %v85
    %v204 = vunpack.c.l.b16 %v86
    %v205 = vunpack.c.h.b16 %v86
    %v206 = vunpack.c.l.b16 %v87
    %v207 = vunpack.c.h.b16 %v87
    %v208 = vunpack.c.l.b16 %v88
    %v209 = vunpack.c.h.b16 %v88
    %v210 = vunpack.c.l.b16 %v89
    %v211 = vunpack.c.h.b16 %v89
    %v212 = vunpack.c.l.b16 %v90
    %v213 = vunpack.c.h.b16 %v90
    %v214 = vunpack.c.l.b16 %v91
    %v215 = vunpack.c.h.b16 %v91
    %v216 = vunpack.c.l.b16 %v92
    %v217 = vunpack.c.h.b16 %v92
    %v218 = vunpack.c.l.b16 %v93
    %v219 = vunpack.c.h.b16 %v93
    %v220 = vunpack.c.l.b16 %v94
    %v221 = vunpack.c.h.b16 %v94
    %v222 = vunpack.c.l.b16 %v95
    %v223 = vunpack.c.h.b16 %v95
    %v224 = vunpack.c.l.b16 %v96
    %v225 = vunpack.c.h.b16 %v96
    %v226 = vunpack.c.l.b16 %v97
    %v227 = vunpack.c.h.b16 %v97
    %v228 = vunpack.c.l.b16 %v98
    %v229 = vunpack.c.h.b16 %v98
    %v230 = vunpack.c.l.b16 %v99
    %v231 = vunpack.c.h.b16 %v99
    %v232 = vunpack.c.l.b16 %v100
    %v233 = vunpack.c.h.b16 %v100
    %v234 = vunpack.c.l.b16 %v101
    %v235 = vunpack.c.h.b16 %v101
    %v236 = vunpack.c.l.b16 %v102
    %v237 = vunpack.c.h.b16 %v102
    %v238 = vunpack.c.l.b16 %v103
    %v239 = vunpack.c.h.b16 %v103
    %v240 = vunpack.c.l.b16 %v104
    %v241 = vunpack.c.h.b16 %v104
    %v242 = vunpack.c.l.b16 %v105
    %v243 = vunpack.c.h.b16 %v105
    %v244 = vpack.c.b16 %v188, %v180
    %v245 = vpack.c.b16 %v189, %v181
    %v246 = vpack.c.b16 %v190, %v182
    %v247 = vpack.c.b16 %v191, %v183
    %v248 = vpack.c.b16 %v192, %v184
    %v249 = vpack.c.b16 %v193, %v185
    %v250 = vpack.c.b16 %v194, %v186
    %v251 = vpack.c.b16 %v195, %v187
    %v252 = vpack.c.b16 %v204, %v196
    %v253 = vpack.c.b16 %v205, %v197
    %v254 = vpack.c.b16 %v206, %v198
    %v255 = vpack.c.b16 %v207, %v199
    %v256 = vpack.c.b16 %v208, %v200
    %v257 = vpack.c.b16 %v209, %v201
    %v258 = vpack.c.b16 %v210, %v202
    %v259 = vpack.c.b16 %v211, %v203
    %v260 = vpack.c.b16 %v220, %v212
    %v261 = vpack.c.b16 %v221, %v213
    %v262 = vpack.c.b16 %v222, %v214
    %v263 = vpack.c.b16 %v223, %v215
    %v264 = vpack.c.b16 %v224, %v216
    %v265 = vpack.c.b16 %v225, %v217
    %v266 = vpack.c.b16 %v226, %v218
    %v267 = vpack.c.b16 %v227, %v219
    %v268 = vpack.c.b16 %v236, %v228
    %v269 = vpack.c.b16 %v237, %v229
    %v270 = vpack.c.b16 %v238, %v230
    %v271 = vpack.c.b16 %v239, %v231
    %v272 = vpack.c.b16 %v240, %v232
    %v273 = vpack.c.b16 %v241, %v233
    %v274 = vpack.c.b16 %v242, %v234
    %v275 = vpack.c.b16 %v243, %v235
    %vm308 = vcmask 523264
    %v310 = vsel %vm308, %v73, 0
    %312 = vmatprep.subr.bf16.mxu0 0
    %313 = vmatpush1.bf16.msra.mxu0 0
    %314 = vmatprep.subr.bf16.mxu0 0
    %315 = vmatpush1.bf16.msra.mxu0 0
    %316 = vmatprep.subr.bf16.mxu0 0
    %317 = vmatpush1.bf16.msra.mxu0 0
    %318 = vmatprep.subr.bf16.mxu0 0
    %319 = vmatpush1.bf16.msra.mxu0 0
    %320 = vmatprep.subr.bf16.mxu0 %v269
    %321 = vmatpush1.bf16.msra.mxu0 %v268
    %322 = vmatprep.subr.bf16.mxu0 %v261
    %323 = vmatpush1.bf16.msra.mxu0 %v260
    %324 = vmatprep.subr.bf16.mxu0 %v253
    %325 = vmatpush1.bf16.msra.mxu0 %v252
    %326 = vmatprep.subr.bf16.mxu0 %v245
    %327 = vmatpush1.bf16.msra.mxu0 %v244
    %328 = vmatprep.subr.bf16.mxu0 0
    %329 = vmatpush2.bf16.msra.mxu0 0
    %330 = vmatprep.subr.bf16.mxu0 0
    %331 = vmatpush2.bf16.msra.mxu0 0
    %332 = vmatprep.subr.bf16.mxu0 0
    %333 = vmatpush2.bf16.msra.mxu0 0
    %334 = vmatprep.subr.bf16.mxu0 0
    %335 = vmatpush2.bf16.msra.mxu0 0
    %336 = vmatprep.subr.bf16.mxu0 0
    %337 = vmatpush2.bf16.msra.mxu0 0
    %338 = vmatprep.subr.bf16.mxu0 0
    %339 = vmatpush2.bf16.msra.mxu0 0
    %340 = vmatprep.subr.bf16.mxu0 0
    %341 = vmatpush2.bf16.msra.mxu0 0
    %342 = vmatprep.subr.bf16.mxu0 0
    %343 = vmatpush2.bf16.msra.mxu0 0
    %344 = vmatprep.mubr.bf16.mxu0 0
    %345 = vmatmul.mubr.bf16.gmra.mxu0 %v310
    %v346 = vpop.f32.mrf.mxu0
    %v347 = vadd.f32 %v111, %v346
    %v348 = vpop.f32.mrf.mxu0
    %v349 = vadd.f32 %v115, %v348
    %v350 = vpop.f32.mrf.mxu0
    %v351 = vpop.f32.mrf.mxu0
    %352 = vdwg.mxu0
    %353 = vmatprep.subr.bf16.mxu0 0
    %354 = vmatpush1.bf16.msra.mxu0 0
    %355 = vmatprep.subr.bf16.mxu0 0
    %356 = vmatpush1.bf16.msra.mxu0 0
    %357 = vmatprep.subr.bf16.mxu0 0
    %358 = vmatpush1.bf16.msra.mxu0 0
    %359 = vmatprep.subr.bf16.mxu0 0
    %360 = vmatpush1.bf16.msra.mxu0 0
    %361 = vmatprep.subr.bf16.mxu0 %v271
    %362 = vmatpush1.bf16.msra.mxu0 %v270
    %363 = vmatprep.subr.bf16.mxu0 %v263
    %364 = vmatpush1.bf16.msra.mxu0 %v262
    %365 = vmatprep.subr.bf16.mxu0 %v255
    %366 = vmatpush1.bf16.msra.mxu0 %v254
    %367 = vmatprep.subr.bf16.mxu0 %v247
    %368 = vmatpush1.bf16.msra.mxu0 %v246
    %369 = vmatprep.subr.bf16.mxu0 0
    %370 = vmatpush2.bf16.msra.mxu0 0
    %371 = vmatprep.subr.bf16.mxu0 0
    %372 = vmatpush2.bf16.msra.mxu0 0
    %373 = vmatprep.subr.bf16.mxu0 0
    %374 = vmatpush2.bf16.msra.mxu0 0
    %375 = vmatprep.subr.bf16.mxu0 0
    %376 = vmatpush2.bf16.msra.mxu0 0
    %377 = vmatprep.subr.bf16.mxu0 0
    %378 = vmatpush2.bf16.msra.mxu0 0
    %379 = vmatprep.subr.bf16.mxu0 0
    %380 = vmatpush2.bf16.msra.mxu0 0
    %381 = vmatprep.subr.bf16.mxu0 0
    %382 = vmatpush2.bf16.msra.mxu0 0
    %383 = vmatprep.subr.bf16.mxu0 0
    %384 = vmatpush2.bf16.msra.mxu0 0
    %385 = vmatprep.mubr.bf16.mxu0 0
    %386 = vmatmul.mubr.bf16.gmra.mxu0 %v310
    %v387 = vpop.f32.mrf.mxu0
    %v388 = vadd.f32 %v119, %v387
    %v389 = vpop.f32.mrf.mxu0
    %v390 = vadd.f32 %v123, %v389
    %v391 = vpop.f32.mrf.mxu0
    %v392 = vpop.f32.mrf.mxu0
    %393 = vdwg.mxu0
    %394 = vmatprep.subr.bf16.mxu0 0
    %395 = vmatpush1.bf16.msra.mxu0 0
    %396 = vmatprep.subr.bf16.mxu0 0
    %397 = vmatpush1.bf16.msra.mxu0 0
    %398 = vmatprep.subr.bf16.mxu0 0
    %399 = vmatpush1.bf16.msra.mxu0 0
    %400 = vmatprep.subr.bf16.mxu0 0
    %401 = vmatpush1.bf16.msra.mxu0 0
    %402 = vmatprep.subr.bf16.mxu0 %v273
    %403 = vmatpush1.bf16.msra.mxu0 %v272
    %404 = vmatprep.subr.bf16.mxu0 %v265
    %405 = vmatpush1.bf16.msra.mxu0 %v264
    %406 = vmatprep.subr.bf16.mxu0 %v257
    %407 = vmatpush1.bf16.msra.mxu0 %v256
    %408 = vmatprep.subr.bf16.mxu0 %v249
    %409 = vmatpush1.bf16.msra.mxu0 %v248
    %410 = vmatprep.subr.bf16.mxu0 0
    %411 = vmatpush2.bf16.msra.mxu0 0
    %412 = vmatprep.subr.bf16.mxu0 0
    %413 = vmatpush2.bf16.msra.mxu0 0
    %414 = vmatprep.subr.bf16.mxu0 0
    %415 = vmatpush2.bf16.msra.mxu0 0
    %416 = vmatprep.subr.bf16.mxu0 0
    %417 = vmatpush2.bf16.msra.mxu0 0
    %418 = vmatprep.subr.bf16.mxu0 0
    %419 = vmatpush2.bf16.msra.mxu0 0
    %420 = vmatprep.subr.bf16.mxu0 0
    %421 = vmatpush2.bf16.msra.mxu0 0
    %422 = vmatprep.subr.bf16.mxu0 0
    %423 = vmatpush2.bf16.msra.mxu0 0
    %424 = vmatprep.subr.bf16.mxu0 0
    %425 = vmatpush2.bf16.msra.mxu0 0
    %426 = vmatprep.mubr.bf16.mxu0 0
    %427 = vmatmul.mubr.bf16.gmra.mxu0 %v310
    %v428 = vpop.f32.mrf.mxu0
    %v429 = vadd.f32 %v127, %v428
    %v430 = vpop.f32.mrf.mxu0
    %v431 = vadd.f32 %v131, %v430
    %v432 = vpop.f32.mrf.mxu0
    %v433 = vpop.f32.mrf.mxu0
    %434 = vdwg.mxu0
    %435 = vmatprep.subr.bf16.mxu0 0
    %436 = vmatpush1.bf16.msra.mxu0 0
    %437 = vmatprep.subr.bf16.mxu0 0
    %438 = vmatpush1.bf16.msra.mxu0 0
    %439 = vmatprep.subr.bf16.mxu0 0
    %440 = vmatpush1.bf16.msra.mxu0 0
    %441 = vmatprep.subr.bf16.mxu0 0
    %442 = vmatpush1.bf16.msra.mxu0 0
    %443 = vmatprep.subr.bf16.mxu0 %v275
    %444 = vmatpush1.bf16.msra.mxu0 %v274
    %445 = vmatprep.subr.bf16.mxu0 %v267
    %446 = vmatpush1.bf16.msra.mxu0 %v266
    %447 = vmatprep.subr.bf16.mxu0 %v259
    %448 = vmatpush1.bf16.msra.mxu0 %v258
    %449 = vmatprep.subr.bf16.mxu0 %v251
    %450 = vmatpush1.bf16.msra.mxu0 %v250
    %451 = vmatprep.subr.bf16.mxu0 0
    %452 = vmatpush2.bf16.msra.mxu0 0
    %453 = vmatprep.subr.bf16.mxu0 0
    %454 = vmatpush2.bf16.msra.mxu0 0
    %455 = vmatprep.subr.bf16.mxu0 0
    %456 = vmatpush2.bf16.msra.mxu0 0
    %457 = vmatprep.subr.bf16.mxu0 0
    %458 = vmatpush2.bf16.msra.mxu0 0
    %459 = vmatprep.subr.bf16.mxu0 0
    %460 = vmatpush2.bf16.msra.mxu0 0
    %461 = vmatprep.subr.bf16.mxu0 0
    %462 = vmatpush2.bf16.msra.mxu0 0
    %463 = vmatprep.subr.bf16.mxu0 0
    %464 = vmatpush2.bf16.msra.mxu0 0
    %465 = vmatprep.subr.bf16.mxu0 0
    %466 = vmatpush2.bf16.msra.mxu0 0
    %467 = vmatprep.mubr.bf16.mxu0 0
    %468 = vmatmul.mubr.bf16.gmra.mxu0 %v310
    %v469 = vpop.f32.mrf.mxu0
    %v470 = vadd.f32 %v135, %v469
    %v471 = vpop.f32.mrf.mxu0
    %v472 = vadd.f32 %v139, %v471
    %v473 = vpop.f32.mrf.mxu0
    %v474 = vpop.f32.mrf.mxu0
    %475 = vdwg.mxu0
    %v476 = vmax.f32 %v347, 0.0
    %v477 = vmax.f32 %v349, 0.0
    %v478 = vmax.f32 %v388, 0.0
    %v479 = vmax.f32 %v390, 0.0
    %v480 = vmax.f32 %v429, 0.0
    %v481 = vmax.f32 %v431, 0.0
    %v482 = vmax.f32 %v470, 0.0
    %v483 = vmax.f32 %v472, 0.0
    %v484 = vpack.c.bf16 %v476, %v476
    %v485 = vpack.c.bf16 %v477, %v477
    %v486 = vpack.c.bf16 %v478, %v478
    %v487 = vpack.c.bf16 %v479, %v479
    %v488 = vpack.c.bf16 %v480, %v480
    %v489 = vpack.c.bf16 %v481, %v481
    %v490 = vpack.c.bf16 %v482, %v482
    %v491 = vpack.c.bf16 %v483, %v483
    %v492 = vld [vmem:[#allocation7] sm:$0xf]
    %v493 = vld [vmem:[#allocation7 + $0x4] sm:$0xf]
    %v494 = vld [vmem:[#allocation7 + $0x8] sm:$0xf]
    %v495 = vld [vmem:[#allocation7 + $0xc] sm:$0xf]
    %v496 = vld [vmem:[#allocation7 + $0x10] sm:$0xf]
    %v497 = vld [vmem:[#allocation7 + $0x14] sm:$0xf]
    %v498 = vld [vmem:[#allocation7 + $0x18] sm:$0xf]
    %v499 = vld [vmem:[#allocation7 + $0x1c] sm:$0xf]
    %v500 = vld [vmem:[#allocation7 + $0x20] sm:$0xf]
    %v501 = vld [vmem:[#allocation7 + $0x24] sm:$0xf]
    %v502 = vld [vmem:[#allocation7 + $0x28] sm:$0xf]
    %v503 = vld [vmem:[#allocation7 + $0x2c] sm:$0xf]
    %v504 = vld [vmem:[#allocation7 + $0x30] sm:$0xf]
    %v505 = vld [vmem:[#allocation7 + $0x34] sm:$0xf]
    %v506 = vld [vmem:[#allocation7 + $0x38] sm:$0xf]
    %v507 = vld [vmem:[#allocation7 + $0x3c] sm:$0xf]
    %v508 = vld [vmem:[#allocation7 + $0x40] sm:$0xf]
    %v509 = vld [vmem:[#allocation7 + $0x44] sm:$0xf]
    %v510 = vld [vmem:[#allocation7 + $0x48] sm:$0xf]
    %v511 = vld [vmem:[#allocation7 + $0x4c] sm:$0xf]
    %v512 = vld [vmem:[#allocation7 + $0x50] sm:$0xf]
    %v513 = vld [vmem:[#allocation7 + $0x54] sm:$0xf]
    %v514 = vld [vmem:[#allocation7 + $0x58] sm:$0xf]
    %v515 = vld [vmem:[#allocation7 + $0x5c] sm:$0xf]
    %v516 = vld [vmem:[#allocation7 + $0x60] sm:$0xf]
    %v517 = vld [vmem:[#allocation7 + $0x64] sm:$0xf]
    %v518 = vld [vmem:[#allocation7 + $0x68] sm:$0xf]
    %v519 = vld [vmem:[#allocation7 + $0x6c] sm:$0xf]
    %v520 = vld [vmem:[#allocation7 + $0x70] sm:$0xf]
    %v521 = vld [vmem:[#allocation7 + $0x74] sm:$0xf]
    %v522 = vld [vmem:[#allocation7 + $0x78] sm:$0xf]
    %v523 = vld [vmem:[#allocation7 + $0x7c] sm:$0xf]
    %v524 = vld [vmem:[#allocation7 + $0x80] sm:$0xf]
    %v525 = vld [vmem:[#allocation7 + $0x84] sm:$0xf]
    %v526 = vld [vmem:[#allocation7 + $0x88] sm:$0xf]
    %v527 = vld [vmem:[#allocation7 + $0x8c] sm:$0xf]
    %v528 = vld [vmem:[#allocation7 + $0x90] sm:$0xf]
    %v529 = vld [vmem:[#allocation7 + $0x94] sm:$0xf]
    %v530 = vld [vmem:[#allocation7 + $0x98] sm:$0xf]
    %v531 = vld [vmem:[#allocation7 + $0x9c] sm:$0xf]
    %v532 = vld [vmem:[#allocation7 + $0xa0] sm:$0xf]
    %v533 = vld [vmem:[#allocation7 + $0xa4] sm:$0xf]
    %v534 = vld [vmem:[#allocation7 + $0xa8] sm:$0xf]
    %v535 = vld [vmem:[#allocation7 + $0xac] sm:$0xf]
    %v536 = vld [vmem:[#allocation7 + $0xb0] sm:$0xf]
    %v537 = vld [vmem:[#allocation7 + $0xb4] sm:$0xf]
    %v538 = vld [vmem:[#allocation7 + $0xb8] sm:$0xf]
    %v539 = vld [vmem:[#allocation7 + $0xbc] sm:$0xf]
    %v540 = vld [vmem:[#allocation7 + $0xc0] sm:$0xf]
    %v541 = vld [vmem:[#allocation7 + $0xc4] sm:$0xf]
    %v542 = vld [vmem:[#allocation7 + $0xc8] sm:$0xf]
    %v543 = vld [vmem:[#allocation7 + $0xcc] sm:$0xf]
    %v544 = vld [vmem:[#allocation7 + $0xd0] sm:$0xf]
    %v545 = vld [vmem:[#allocation7 + $0xd4] sm:$0xf]
    %v546 = vld [vmem:[#allocation7 + $0xd8] sm:$0xf]
    %v547 = vld [vmem:[#allocation7 + $0xdc] sm:$0xf]
    %v548 = vld [vmem:[#allocation7 + $0xe0] sm:$0xf]
    %v549 = vld [vmem:[#allocation7 + $0xe4] sm:$0xf]
    %v550 = vld [vmem:[#allocation7 + $0xe8] sm:$0xf]
    %v551 = vld [vmem:[#allocation7 + $0xec] sm:$0xf]
    %v552 = vld [vmem:[#allocation7 + $0xf0] sm:$0xf]
    %v553 = vld [vmem:[#allocation7 + $0xf4] sm:$0xf]
    %v554 = vld [vmem:[#allocation7 + $0xf8] sm:$0xf]
    %v555 = vld [vmem:[#allocation7 + $0xfc] sm:$0xf]
    %v556 = vld [vmem:[#allocation7 + $0x100] sm:$0xf]
    %v557 = vld [vmem:[#allocation7 + $0x104] sm:$0xf]
    %v558 = vld [vmem:[#allocation7 + $0x108] sm:$0xf]
    %v559 = vld [vmem:[#allocation7 + $0x10c] sm:$0xf]
    %v560 = vld [vmem:[#allocation7 + $0x110] sm:$0xf]
    %v561 = vld [vmem:[#allocation7 + $0x114] sm:$0xf]
    %v562 = vld [vmem:[#allocation7 + $0x118] sm:$0xf]
    %v563 = vld [vmem:[#allocation7 + $0x11c] sm:$0xf]
    %v564 = vld [vmem:[#allocation7 + $0x120] sm:$0xf]
    %v565 = vld [vmem:[#allocation7 + $0x124] sm:$0xf]
    %v566 = vld [vmem:[#allocation7 + $0x128] sm:$0xf]
    %v567 = vld [vmem:[#allocation7 + $0x12c] sm:$0xf]
    %v568 = vld [vmem:[#allocation7 + $0x130] sm:$0xf]
    %v569 = vld [vmem:[#allocation7 + $0x134] sm:$0xf]
    %v570 = vld [vmem:[#allocation7 + $0x138] sm:$0xf]
    %v571 = vld [vmem:[#allocation7 + $0x13c] sm:$0xf]
    %v572 = vld [vmem:[#allocation7 + $0x140] sm:$0xf]
    %v573 = vld [vmem:[#allocation7 + $0x144] sm:$0xf]
    %v574 = vld [vmem:[#allocation7 + $0x148] sm:$0xf]
    %v575 = vld [vmem:[#allocation7 + $0x14c] sm:$0xf]
    %v576 = vld [vmem:[#allocation7 + $0x150] sm:$0xf]
    %v577 = vld [vmem:[#allocation7 + $0x154] sm:$0xf]
    %v578 = vld [vmem:[#allocation7 + $0x158] sm:$0xf]
    %v579 = vld [vmem:[#allocation7 + $0x15c] sm:$0xf]
    %v580 = vld [vmem:[#allocation7 + $0x160] sm:$0xf]
    %v581 = vld [vmem:[#allocation7 + $0x164] sm:$0xf]
    %v582 = vld [vmem:[#allocation7 + $0x168] sm:$0xf]
    %v583 = vld [vmem:[#allocation7 + $0x16c] sm:$0xf]
    %v584 = vld [vmem:[#allocation7 + $0x170] sm:$0xf]
    %v585 = vld [vmem:[#allocation7 + $0x174] sm:$0xf]
    %v586 = vld [vmem:[#allocation7 + $0x178] sm:$0xf]
    %v587 = vld [vmem:[#allocation7 + $0x17c] sm:$0xf]
    %v588 = vld [vmem:[#allocation7 + $0x180] sm:$0xf]
    %v589 = vld [vmem:[#allocation7 + $0x184] sm:$0xf]
    %v590 = vld [vmem:[#allocation7 + $0x188] sm:$0xf]
    %v591 = vld [vmem:[#allocation7 + $0x18c] sm:$0xf]
    %v592 = vld [vmem:[#allocation7 + $0x190] sm:$0xf]
    %v593 = vld [vmem:[#allocation7 + $0x194] sm:$0xf]
    %v594 = vld [vmem:[#allocation7 + $0x198] sm:$0xf]
    %v595 = vld [vmem:[#allocation7 + $0x19c] sm:$0xf]
    %v596 = vld [vmem:[#allocation7 + $0x1a0] sm:$0xf]
    %v597 = vld [vmem:[#allocation7 + $0x1a4] sm:$0xf]
    %v598 = vld [vmem:[#allocation7 + $0x1a8] sm:$0xf]
    %v599 = vld [vmem:[#allocation7 + $0x1ac] sm:$0xf]
    %v600 = vld [vmem:[#allocation7 + $0x1b0] sm:$0xf]
    %v601 = vld [vmem:[#allocation7 + $0x1b4] sm:$0xf]
    %v602 = vld [vmem:[#allocation7 + $0x1b8] sm:$0xf]
    %v603 = vld [vmem:[#allocation7 + $0x1bc] sm:$0xf]
    %v604 = vld [vmem:[#allocation7 + $0x1c0] sm:$0xf]
    %v605 = vld [vmem:[#allocation7 + $0x1c4] sm:$0xf]
    %v606 = vld [vmem:[#allocation7 + $0x1c8] sm:$0xf]
    %v607 = vld [vmem:[#allocation7 + $0x1cc] sm:$0xf]
    %v608 = vld [vmem:[#allocation7 + $0x1d0] sm:$0xf]
    %v609 = vld [vmem:[#allocation7 + $0x1d4] sm:$0xf]
    %v610 = vld [vmem:[#allocation7 + $0x1d8] sm:$0xf]
    %v611 = vld [vmem:[#allocation7 + $0x1dc] sm:$0xf]
    %v612 = vld [vmem:[#allocation7 + $0x1e0] sm:$0xf]
    %v613 = vld [vmem:[#allocation7 + $0x1e4] sm:$0xf]
    %v614 = vld [vmem:[#allocation7 + $0x1e8] sm:$0xf]
    %v615 = vld [vmem:[#allocation7 + $0x1ec] sm:$0xf]
    %v616 = vld [vmem:[#allocation7 + $0x1f0] sm:$0xf]
    %v617 = vld [vmem:[#allocation7 + $0x1f4] sm:$0xf]
    %v618 = vld [vmem:[#allocation7 + $0x1f8] sm:$0xf]
    %v619 = vld [vmem:[#allocation7 + $0x1fc] sm:$0xf]
    %v620 = vld [vmem:[%s4] sm:$0x1]
    %v622 = vlaneseq
    %v623 = vshrl.u32 %v622, 7
    %v624 = vsub.s32 0, %v623
    %v625 = vrot.slane %v620, %v624
    %v755 = vunpack.c.l.b16 %v492
    %v756 = vunpack.c.l.b16 %v493
    %v757 = vunpack.c.l.b16 %v494
    %v758 = vunpack.c.l.b16 %v495
    %v759 = vunpack.c.l.b16 %v496
    %v760 = vunpack.c.l.b16 %v497
    %v761 = vunpack.c.l.b16 %v498
    %v762 = vunpack.c.l.b16 %v499
    %v763 = vunpack.c.l.b16 %v500
    %v764 = vunpack.c.l.b16 %v501
    %v765 = vunpack.c.l.b16 %v502
    %v766 = vunpack.c.l.b16 %v503
    %v767 = vunpack.c.l.b16 %v504
    %v768 = vunpack.c.l.b16 %v505
    %v769 = vunpack.c.l.b16 %v506
    %v770 = vunpack.c.l.b16 %v507
    %v771 = vunpack.c.l.b16 %v508
    %v772 = vunpack.c.l.b16 %v509
    %v773 = vunpack.c.l.b16 %v510
    %v774 = vunpack.c.l.b16 %v511
    %v775 = vunpack.c.l.b16 %v512
    %v776 = vunpack.c.l.b16 %v513
    %v777 = vunpack.c.l.b16 %v514
    %v778 = vunpack.c.l.b16 %v515
    %v779 = vunpack.c.l.b16 %v516
    %v780 = vunpack.c.l.b16 %v517
    %v781 = vunpack.c.l.b16 %v518
    %v782 = vunpack.c.l.b16 %v519
    %v783 = vunpack.c.l.b16 %v520
    %v784 = vunpack.c.l.b16 %v521
    %v785 = vunpack.c.l.b16 %v522
    %v786 = vunpack.c.l.b16 %v523
    %v787 = vunpack.c.l.b16 %v524
    %v788 = vunpack.c.l.b16 %v525
    %v789 = vunpack.c.l.b16 %v526
    %v790 = vunpack.c.l.b16 %v527
    %v791 = vunpack.c.l.b16 %v528
    %v792 = vunpack.c.l.b16 %v529
    %v793 = vunpack.c.l.b16 %v530
    %v794 = vunpack.c.l.b16 %v531
    %v795 = vunpack.c.l.b16 %v532
    %v796 = vunpack.c.l.b16 %v533
    %v797 = vunpack.c.l.b16 %v534
    %v798 = vunpack.c.l.b16 %v535
    %v799 = vunpack.c.l.b16 %v536
    %v800 = vunpack.c.l.b16 %v537
    %v801 = vunpack.c.l.b16 %v538
    %v802 = vunpack.c.l.b16 %v539
    %v803 = vunpack.c.l.b16 %v540
    %v804 = vunpack.c.l.b16 %v541
    %v805 = vunpack.c.l.b16 %v542
    %v806 = vunpack.c.l.b16 %v543
    %v807 = vunpack.c.l.b16 %v544
    %v808 = vunpack.c.l.b16 %v545
    %v809 = vunpack.c.l.b16 %v546
    %v810 = vunpack.c.l.b16 %v547
    %v811 = vunpack.c.l.b16 %v548
    %v812 = vunpack.c.l.b16 %v549
    %v813 = vunpack.c.l.b16 %v550
    %v814 = vunpack.c.l.b16 %v551
    %v815 = vunpack.c.l.b16 %v552
    %v816 = vunpack.c.l.b16 %v553
    %v817 = vunpack.c.l.b16 %v554
    %v818 = vunpack.c.l.b16 %v555
    %v819 = vunpack.c.l.b16 %v556
    %v820 = vunpack.c.l.b16 %v557
    %v821 = vunpack.c.l.b16 %v558
    %v822 = vunpack.c.l.b16 %v559
    %v823 = vunpack.c.l.b16 %v560
    %v824 = vunpack.c.l.b16 %v561
    %v825 = vunpack.c.l.b16 %v562
    %v826 = vunpack.c.l.b16 %v563
    %v827 = vunpack.c.l.b16 %v564
    %v828 = vunpack.c.l.b16 %v565
    %v829 = vunpack.c.l.b16 %v566
    %v830 = vunpack.c.l.b16 %v567
    %v831 = vunpack.c.l.b16 %v568
    %v832 = vunpack.c.l.b16 %v569
    %v833 = vunpack.c.l.b16 %v570
    %v834 = vunpack.c.l.b16 %v571
    %v835 = vunpack.c.l.b16 %v572
    %v836 = vunpack.c.l.b16 %v573
    %v837 = vunpack.c.l.b16 %v574
    %v838 = vunpack.c.l.b16 %v575
    %v839 = vunpack.c.l.b16 %v576
    %v840 = vunpack.c.l.b16 %v577
    %v841 = vunpack.c.l.b16 %v578
    %v842 = vunpack.c.l.b16 %v579
    %v843 = vunpack.c.l.b16 %v580
    %v844 = vunpack.c.l.b16 %v581
    %v845 = vunpack.c.l.b16 %v582
    %v846 = vunpack.c.l.b16 %v583
    %v847 = vunpack.c.l.b16 %v584
    %v848 = vunpack.c.l.b16 %v585
    %v849 = vunpack.c.l.b16 %v586
    %v850 = vunpack.c.l.b16 %v587
    %v851 = vunpack.c.l.b16 %v588
    %v852 = vunpack.c.l.b16 %v589
    %v853 = vunpack.c.l.b16 %v590
    %v854 = vunpack.c.l.b16 %v591
    %v855 = vunpack.c.l.b16 %v592
    %v856 = vunpack.c.l.b16 %v593
    %v857 = vunpack.c.l.b16 %v594
    %v858 = vunpack.c.l.b16 %v595
    %v859 = vunpack.c.l.b16 %v596
    %v860 = vunpack.c.l.b16 %v597
    %v861 = vunpack.c.l.b16 %v598
    %v862 = vunpack.c.l.b16 %v599
    %v863 = vunpack.c.l.b16 %v600
    %v864 = vunpack.c.l.b16 %v601
    %v865 = vunpack.c.l.b16 %v602
    %v866 = vunpack.c.l.b16 %v603
    %v867 = vunpack.c.l.b16 %v604
    %v868 = vunpack.c.l.b16 %v605
    %v869 = vunpack.c.l.b16 %v606
    %v870 = vunpack.c.l.b16 %v607
    %v871 = vunpack.c.l.b16 %v608
    %v872 = vunpack.c.l.b16 %v609
    %v873 = vunpack.c.l.b16 %v610
    %v874 = vunpack.c.l.b16 %v611
    %v875 = vunpack.c.l.b16 %v612
    %v876 = vunpack.c.l.b16 %v613
    %v877 = vunpack.c.l.b16 %v614
    %v878 = vunpack.c.l.b16 %v615
    %v879 = vunpack.c.l.b16 %v616
    %v880 = vunpack.c.l.b16 %v617
    %v881 = vunpack.c.l.b16 %v618
    %v882 = vunpack.c.l.b16 %v619
    %v883 = vpack.c.b16 %v756, %v755
    %v884 = vpack.c.b16 %v758, %v757
    %v885 = vpack.c.b16 %v760, %v759
    %v886 = vpack.c.b16 %v762, %v761
    %v887 = vpack.c.b16 %v764, %v763
    %v888 = vpack.c.b16 %v766, %v765
    %v889 = vpack.c.b16 %v768, %v767
    %v890 = vpack.c.b16 %v770, %v769
    %v891 = vpack.c.b16 %v772, %v771
    %v892 = vpack.c.b16 %v774, %v773
    %v893 = vpack.c.b16 %v776, %v775
    %v894 = vpack.c.b16 %v778, %v777
    %v895 = vpack.c.b16 %v780, %v779
    %v896 = vpack.c.b16 %v782, %v781
    %v897 = vpack.c.b16 %v784, %v783
    %v898 = vpack.c.b16 %v786, %v785
    %v899 = vpack.c.b16 %v788, %v787
    %v900 = vpack.c.b16 %v790, %v789
    %v901 = vpack.c.b16 %v792, %v791
    %v902 = vpack.c.b16 %v794, %v793
    %v903 = vpack.c.b16 %v796, %v795
    %v904 = vpack.c.b16 %v798, %v797
    %v905 = vpack.c.b16 %v800, %v799
    %v906 = vpack.c.b16 %v802, %v801
    %v907 = vpack.c.b16 %v804, %v803
    %v908 = vpack.c.b16 %v806, %v805
    %v909 = vpack.c.b16 %v808, %v807
    %v910 = vpack.c.b16 %v810, %v809
    %v911 = vpack.c.b16 %v812, %v811
    %v912 = vpack.c.b16 %v814, %v813
    %v913 = vpack.c.b16 %v816, %v815
    %v914 = vpack.c.b16 %v818, %v817
    %v915 = vpack.c.b16 %v820, %v819
    %v916 = vpack.c.b16 %v822, %v821
    %v917 = vpack.c.b16 %v824, %v823
    %v918 = vpack.c.b16 %v826, %v825
    %v919 = vpack.c.b16 %v828, %v827
    %v920 = vpack.c.b16 %v830, %v829
    %v921 = vpack.c.b16 %v832, %v831
    %v922 = vpack.c.b16 %v834, %v833
    %v923 = vpack.c.b16 %v836, %v835
    %v924 = vpack.c.b16 %v838, %v837
    %v925 = vpack.c.b16 %v840, %v839
    %v926 = vpack.c.b16 %v842, %v841
    %v927 = vpack.c.b16 %v844, %v843
    %v928 = vpack.c.b16 %v846, %v845
    %v929 = vpack.c.b16 %v848, %v847
    %v930 = vpack.c.b16 %v850, %v849
    %v931 = vpack.c.b16 %v852, %v851
    %v932 = vpack.c.b16 %v854, %v853
    %v933 = vpack.c.b16 %v856, %v855
    %v934 = vpack.c.b16 %v858, %v857
    %v935 = vpack.c.b16 %v860, %v859
    %v936 = vpack.c.b16 %v862, %v861
    %v937 = vpack.c.b16 %v864, %v863
    %v938 = vpack.c.b16 %v866, %v865
    %v939 = vpack.c.b16 %v868, %v867
    %v940 = vpack.c.b16 %v870, %v869
    %v941 = vpack.c.b16 %v872, %v871
    %v942 = vpack.c.b16 %v874, %v873
    %v943 = vpack.c.b16 %v876, %v875
    %v944 = vpack.c.b16 %v878, %v877
    %v945 = vpack.c.b16 %v880, %v879
    %v946 = vpack.c.b16 %v882, %v881
    %1011 = vmatprep.subr.bf16.mxu0 0
    %1012 = vmatpush1.bf16.msra.mxu0 %v890
    %1013 = vmatprep.subr.bf16.mxu0 0
    %1014 = vmatpush1.bf16.msra.mxu0 %v889
    %1015 = vmatprep.subr.bf16.mxu0 0
    %1016 = vmatpush1.bf16.msra.mxu0 %v888
    %1017 = vmatprep.subr.bf16.mxu0 0
    %1018 = vmatpush1.bf16.msra.mxu0 %v887
    %1019 = vmatprep.subr.bf16.mxu0 0
    %1020 = vmatpush1.bf16.msra.mxu0 %v886
    %1021 = vmatprep.subr.bf16.mxu0 0
    %1022 = vmatpush1.bf16.msra.mxu0 %v885
    %1023 = vmatprep.subr.bf16.mxu0 0
    %1024 = vmatpush1.bf16.msra.mxu0 %v884
    %1025 = vmatprep.subr.bf16.mxu0 0
    %1026 = vmatpush1.bf16.msra.mxu0 %v883
    %1027 = vmatprep.subr.bf16.mxu0 0
    %1028 = vmatpush2.bf16.msra.mxu0 %v898
    %1029 = vmatprep.subr.bf16.mxu0 0
    %1030 = vmatpush2.bf16.msra.mxu0 %v897
    %1031 = vmatprep.subr.bf16.mxu0 0
    %1032 = vmatpush2.bf16.msra.mxu0 %v896
    %1033 = vmatprep.subr.bf16.mxu0 0
    %1034 = vmatpush2.bf16.msra.mxu0 %v895
    %1035 = vmatprep.subr.bf16.mxu0 0
    %1036 = vmatpush2.bf16.msra.mxu0 %v894
    %1037 = vmatprep.subr.bf16.mxu0 0
    %1038 = vmatpush2.bf16.msra.mxu0 %v893
    %1039 = vmatprep.subr.bf16.mxu0 0
    %1040 = vmatpush2.bf16.msra.mxu0 %v892
    %1041 = vmatprep.subr.bf16.mxu0 0
    %1042 = vmatpush2.bf16.msra.mxu0 %v891
    %1043 = vmatprep.mubr.bf16.mxu0 %v485
    %1044 = vmatmul.mubr.bf16.gmra.mxu0 %v484
    %v1045 = vpop.f32.mrf.mxu0
    %v1046 = vadd.f32 %v625, %v1045
    %v1047 = vpop.f32.mrf.mxu0
    %v1048 = vpop.f32.mrf.mxu0
    %v1049 = vpop.f32.mrf.mxu0
    %1050 = vdwg.mxu0
    %1051 = vmatprep.subr.bf16.mxu0 0
    %1052 = vmatpush1.bf16.msra.mxu0 %v906
    %1053 = vmatprep.subr.bf16.mxu0 0
    %1054 = vmatpush1.bf16.msra.mxu0 %v905
    %1055 = vmatprep.subr.bf16.mxu0 0
    %1056 = vmatpush1.bf16.msra.mxu0 %v904
    %1057 = vmatprep.subr.bf16.mxu0 0
    %1058 = vmatpush1.bf16.msra.mxu0 %v903
    %1059 = vmatprep.subr.bf16.mxu0 0
    %1060 = vmatpush1.bf16.msra.mxu0 %v902
    %1061 = vmatprep.subr.bf16.mxu0 0
    %1062 = vmatpush1.bf16.msra.mxu0 %v901
    %1063 = vmatprep.subr.bf16.mxu0 0
    %1064 = vmatpush1.bf16.msra.mxu0 %v900
    %1065 = vmatprep.subr.bf16.mxu0 0
    %1066 = vmatpush1.bf16.msra.mxu0 %v899
    %1067 = vmatprep.subr.bf16.mxu0 0
    %1068 = vmatpush2.bf16.msra.mxu0 %v914
    %1069 = vmatprep.subr.bf16.mxu0 0
    %1070 = vmatpush2.bf16.msra.mxu0 %v913
    %1071 = vmatprep.subr.bf16.mxu0 0
    %1072 = vmatpush2.bf16.msra.mxu0 %v912
    %1073 = vmatprep.subr.bf16.mxu0 0
    %1074 = vmatpush2.bf16.msra.mxu0 %v911
    %1075 = vmatprep.subr.bf16.mxu0 0
    %1076 = vmatpush2.bf16.msra.mxu0 %v910
    %1077 = vmatprep.subr.bf16.mxu0 0
    %1078 = vmatpush2.bf16.msra.mxu0 %v909
    %1079 = vmatprep.subr.bf16.mxu0 0
    %1080 = vmatpush2.bf16.msra.mxu0 %v908
    %1081 = vmatprep.subr.bf16.mxu0 0
    %1082 = vmatpush2.bf16.msra.mxu0 %v907
    %1083 = vmatprep.mubr.bf16.mxu0 %v487
    %1084 = vmatmul.mubr.bf16.gmra.mxu0 %v486
    %v1085 = vpop.f32.mrf.mxu0
    %v1086 = vadd.f32 %v1046, %v1085
    %v1087 = vpop.f32.mrf.mxu0
    %v1088 = vpop.f32.mrf.mxu0
    %v1089 = vpop.f32.mrf.mxu0
    %1090 = vdwg.mxu0
    %1091 = vmatprep.subr.bf16.mxu0 0
    %1092 = vmatpush1.bf16.msra.mxu0 %v922
    %1093 = vmatprep.subr.bf16.mxu0 0
    %1094 = vmatpush1.bf16.msra.mxu0 %v921
    %1095 = vmatprep.subr.bf16.mxu0 0
    %1096 = vmatpush1.bf16.msra.mxu0 %v920
    %1097 = vmatprep.subr.bf16.mxu0 0
    %1098 = vmatpush1.bf16.msra.mxu0 %v919
    %1099 = vmatprep.subr.bf16.mxu0 0
    %1100 = vmatpush1.bf16.msra.mxu0 %v918
    %1101 = vmatprep.subr.bf16.mxu0 0
    %1102 = vmatpush1.bf16.msra.mxu0 %v917
    %1103 = vmatprep.subr.bf16.mxu0 0
    %1104 = vmatpush1.bf16.msra.mxu0 %v916
    %1105 = vmatprep.subr.bf16.mxu0 0
    %1106 = vmatpush1.bf16.msra.mxu0 %v915
    %1107 = vmatprep.subr.bf16.mxu0 0
    %1108 = vmatpush2.bf16.msra.mxu0 %v930
    %1109 = vmatprep.subr.bf16.mxu0 0
    %1110 = vmatpush2.bf16.msra.mxu0 %v929
    %1111 = vmatprep.subr.bf16.mxu0 0
    %1112 = vmatpush2.bf16.msra.mxu0 %v928
    %1113 = vmatprep.subr.bf16.mxu0 0
    %1114 = vmatpush2.bf16.msra.mxu0 %v927
    %1115 = vmatprep.subr.bf16.mxu0 0
    %1116 = vmatpush2.bf16.msra.mxu0 %v926
    %1117 = vmatprep.subr.bf16.mxu0 0
    %1118 = vmatpush2.bf16.msra.mxu0 %v925
    %1119 = vmatprep.subr.bf16.mxu0 0
    %1120 = vmatpush2.bf16.msra.mxu0 %v924
    %1121 = vmatprep.subr.bf16.mxu0 0
    %1122 = vmatpush2.bf16.msra.mxu0 %v923
    %1123 = vmatprep.mubr.bf16.mxu0 %v489
    %1124 = vmatmul.mubr.bf16.gmra.mxu0 %v488
    %v1125 = vpop.f32.mrf.mxu0
    %v1126 = vadd.f32 %v1086, %v1125
    %v1127 = vpop.f32.mrf.mxu0
    %v1128 = vpop.f32.mrf.mxu0
    %v1129 = vpop.f32.mrf.mxu0
    %1130 = vdwg.mxu0
    %1131 = vmatprep.subr.bf16.mxu0 0
    %1132 = vmatpush1.bf16.msra.mxu0 %v938
    %1133 = vmatprep.subr.bf16.mxu0 0
    %1134 = vmatpush1.bf16.msra.mxu0 %v937
    %1135 = vmatprep.subr.bf16.mxu0 0
    %1136 = vmatpush1.bf16.msra.mxu0 %v936
    %1137 = vmatprep.subr.bf16.mxu0 0
    %1138 = vmatpush1.bf16.msra.mxu0 %v935
    %1139 = vmatprep.subr.bf16.mxu0 0
    %1140 = vmatpush1.bf16.msra.mxu0 %v934
    %1141 = vmatprep.subr.bf16.mxu0 0
    %1142 = vmatpush1.bf16.msra.mxu0 %v933
    %1143 = vmatprep.subr.bf16.mxu0 0
    %1144 = vmatpush1.bf16.msra.mxu0 %v932
    %1145 = vmatprep.subr.bf16.mxu0 0
    %1146 = vmatpush1.bf16.msra.mxu0 %v931
    %1147 = vmatprep.subr.bf16.mxu0 0
    %1148 = vmatpush2.bf16.msra.mxu0 %v946
    %1149 = vmatprep.subr.bf16.mxu0 0
    %1150 = vmatpush2.bf16.msra.mxu0 %v945
    %1151 = vmatprep.subr.bf16.mxu0 0
    %1152 = vmatpush2.bf16.msra.mxu0 %v944
    %1153 = vmatprep.subr.bf16.mxu0 0
    %1154 = vmatpush2.bf16.msra.mxu0 %v943
    %1155 = vmatprep.subr.bf16.mxu0 0
    %1156 = vmatpush2.bf16.msra.mxu0 %v942
    %1157 = vmatprep.subr.bf16.mxu0 0
    %1158 = vmatpush2.bf16.msra.mxu0 %v941
    %1159 = vmatprep.subr.bf16.mxu0 0
    %1160 = vmatpush2.bf16.msra.mxu0 %v940
    %1161 = vmatprep.subr.bf16.mxu0 0
    %1162 = vmatpush2.bf16.msra.mxu0 %v939
    %1163 = vmatprep.mubr.bf16.mxu0 %v491
    %1164 = vmatmul.mubr.bf16.gmra.mxu0 %v490
    %v1165 = vpop.f32.mrf.mxu0
    %v1166 = vadd.f32 %v1126, %v1165
    %v1167 = vpop.f32.mrf.mxu0
    %v1168 = vpop.f32.mrf.mxu0
    %v1169 = vpop.f32.mrf.mxu0
    %1170 = vdwg.mxu0
    %1171 = vst [vmem:[%s5] sm:$0xff] %v1166
    // Predicated region
    $region38: #{enhanced_box_predictor.1} parent=1 // pred_check
      _
    $region39: #{enhanced_box_predictor.1} parent=1 // pred_check_branch
      %1173 = sbr.rel (0) target = $region41
    $region40: #{enhanced_box_predictor.1} parent=1 // pred_region
      _
    $region41: #{enhanced_box_predictor.1} parent=1 // pred_fallthru
      _
    // Predicated region
    $region42: #{enhanced_box_predictor.1} parent=1 // pred_check
      _
    $region43: #{enhanced_box_predictor.1} parent=1 // pred_check_branch
      %1175 = sbr.rel (0) target = $region45
    $region44: #{enhanced_box_predictor.1} parent=1 // pred_region
      _
    $region45: #{enhanced_box_predictor.1} parent=1 // pred_fallthru
      _
    %1176 = vsyncpa [#allocation3], 1
    %1177 = vsyncpa [#allocation5], 1
    %1178 = vsyncpa [#allocation8], 1

</llo_original>
